<compile_context>
chip_gen: v7x
topology: tpu7x:2x2x1
jax: 0.10.0
libtpu: 0.0.40
codegen_flags: <defaults>
</compile_context>

<pallas_src>
import functools
import math

import jax
import jax.numpy as jnp
from jax.experimental import pallas as pl
from jax.experimental.pallas import tpu as pltpu


_VMEM_LIMIT = 48 * 1024 * 1024        # scoped-VMEM budget; < v7x's 64 MiB physical
_FUSED_SLAB_BUDGET = 24 * 1024 * 1024  # 2x(in)+2x(out) dbl-buffered + f32 temp headroom


def eca_kernel_size(c1, gamma=2, b=1):
    """Same k as the PyTorch module."""
    t = int(abs((math.log(c1, 2) + b) / gamma))
    k = t if t % 2 else t + 1
    return max(k, 3)


def _pick_hw_tile(hw, c, itemsize, target_bytes=4 << 20):
    """Largest lane tile that divides HW, is a multiple of 128, and keeps one
    (C, tile_hw) block around `target_bytes` (big tiles amortize the ~0.35 us
    per-grid-step overhead and keep the DMA near the HBM roofline)."""
    if hw % 128 != 0:
        return hw                                  # small / odd maps: one block per row
    max_lanes = max(128, (target_bytes // (c * itemsize)) // 128 * 128)
    t = min(hw, max_lanes)
    while hw % t != 0:
        t -= 128
    return max(t, 128)


# ---------------------------------------------------------------------------
# Shared helper: ECA 1-D conv across channels (k taps, zero pad) + sigmoid.
#   pooled: (C, 1) f32 register value (channel on sublanes)
#   w_ref : SMEM f32[k]
#   pp_ref: VMEM f32[(C + 2*pad, 1)] scratch used to stage the zero-padded
#           pooled vector (static ref slices only -> robust Mosaic lowering)
# ---------------------------------------------------------------------------
def _conv_sigmoid(pooled, w_ref, pp_ref, C, k, pad):
    pp_ref[...] = jnp.zeros_like(pp_ref)
    pp_ref[pad:pad + C, :] = pooled
    acc = w_ref[0] * pp_ref[0:C, :]
    for j in range(1, k):                          # k is tiny (3/5/7) -> unrolled
        acc = acc + w_ref[j] * pp_ref[j:j + C, :]
    return jax.nn.sigmoid(acc)


# ---------------------------------------------------------------------------
# Fused single-pass kernel: pool -> conv -> sigmoid -> scale, one (C, HW) slab
# per grid step.  x block: [1, C, HW]   out block: [1, C, HW]
# ---------------------------------------------------------------------------
def _fused_kernel(inv_hw, C, k, pad, w_ref, x_ref, out_ref, pp_ref):
    pooled = jnp.sum(x_ref[0].astype(jnp.float32), axis=-1,
                     keepdims=True) * inv_hw                    # (C, 1) f32
    attn = _conv_sigmoid(pooled, w_ref, pp_ref, C, k, pad)       # (C, 1) f32
    x = x_ref[0]
    out_ref[0] = (x * attn.astype(x.dtype)).astype(out_ref.dtype)


# ---------------------------------------------------------------------------
# Two-pass fallback, Kernel A: tiled global-average-pool with the ECA conv +
# sigmoid fused into the finalize step (no separate conv kernel, no HBM
# round-trip for pooled/attn beyond the tiny (B, C, 1) result).
#   x block: [1, C, tile_hw]   attn block: [1, C, 1] (resident over HW axis)
# ---------------------------------------------------------------------------
def _pool_conv_kernel(inv_hw, C, k, pad, w_ref, x_ref, attn_ref, pp_ref):
    t = pl.program_id(1)

    @pl.when(t == 0)
    def _():
        attn_ref[...] = jnp.zeros_like(attn_ref)

    attn_ref[...] += jnp.sum(x_ref[...].astype(jnp.float32), axis=-1,
                             keepdims=True)

    @pl.when(t == pl.num_programs(1) - 1)
    def _():
        pooled = attn_ref[0] * inv_hw                            # (C, 1) f32
        attn_ref[0] = _conv_sigmoid(pooled, w_ref, pp_ref, C, k, pad)


# ---------------------------------------------------------------------------
# Two-pass fallback, Kernel B: elementwise x * attn (per-channel broadcast).
#   x block: [1, C, tile_hw]   attn block: [1, C, 1]   out: [1, C, tile_hw]
# ---------------------------------------------------------------------------
def _scale_kernel(x_ref, attn_ref, out_ref):
    x = x_ref[...]
    out_ref[...] = (x * attn_ref[...].astype(x.dtype)).astype(out_ref.dtype)


# ---------------------------------------------------------------------------
# Wrapper
# ---------------------------------------------------------------------------
def eca_attention(x, w, *, force_two_pass=False, two_pass_tile_hw=None):
    B, C, H, W = x.shape
    HW = H * W
    k = int(w.shape[-1])
    pad = (k - 1) // 2
    itemsize = x.dtype.itemsize

    x3 = x.reshape(B, C, HW)                       # free reshape (NCHW contiguous)
    w = w.reshape(k).astype(jnp.float32)

    slab_bytes = C * HW * itemsize
    fits = (4 * slab_bytes + C * HW * 4) <= _FUSED_SLAB_BUDGET
    use_fused = (not force_two_pass) and (fits or HW % 128 != 0)

    if use_fused:
        # --- single pass: read x once, write out once (2x HBM bytes) --------
        out3 = pl.pallas_call(
            functools.partial(_fused_kernel, 1.0 / HW, C, k, pad),
            out_shape=jax.ShapeDtypeStruct((B, C, HW), x.dtype),
            grid=(B,),
            in_specs=[
                pl.BlockSpec((k,), lambda b: (0,),
                             memory_space=pltpu.MemorySpace.SMEM),
                pl.BlockSpec((1, C, HW), lambda b: (b, 0, 0)),
            ],
            out_specs=pl.BlockSpec((1, C, HW), lambda b: (b, 0, 0)),
            scratch_shapes=[pltpu.VMEM((C + 2 * pad, 1), jnp.float32)],
            compiler_params=pltpu.CompilerParams(
                dimension_semantics=("parallel",),
                vmem_limit_bytes=_VMEM_LIMIT),
        )(w, x3)
        return out3.reshape(B, C, H, W)

    # --- two-pass fallback for slabs that do not fit VMEM -------------------
    tile_hw = _pick_hw_tile(HW, C, itemsize)
    if two_pass_tile_hw is not None and HW % two_pass_tile_hw == 0:
        tile_hw = two_pass_tile_hw
    n_hw = HW // tile_hw

    # Pass 1: attn[b, c] = sigmoid(conv1d_k(mean_s x[b, c, s]))
    attn = pl.pallas_call(
        functools.partial(_pool_conv_kernel, 1.0 / HW, C, k, pad),
        out_shape=jax.ShapeDtypeStruct((B, C, 1), jnp.float32),
        grid=(B, n_hw),
        in_specs=[
            pl.BlockSpec((k,), lambda b, t: (0,),
                         memory_space=pltpu.MemorySpace.SMEM),
            pl.BlockSpec((1, C, tile_hw), lambda b, t: (b, 0, t)),
        ],
        out_specs=pl.BlockSpec((1, C, 1), lambda b, t: (b, 0, 0)),
        scratch_shapes=[pltpu.VMEM((C + 2 * pad, 1), jnp.float32)],
        compiler_params=pltpu.CompilerParams(
            dimension_semantics=("parallel", "arbitrary"),
            vmem_limit_bytes=_VMEM_LIMIT),
    )(w, x3)

    # Pass 2: out = x * attn (broadcast per channel), lane-dense tiles.
    out3 = pl.pallas_call(
        _scale_kernel,
        out_shape=jax.ShapeDtypeStruct((B, C, HW), x.dtype),
        grid=(B, n_hw),
        in_specs=[
            pl.BlockSpec((1, C, tile_hw), lambda b, t: (b, 0, t)),
            pl.BlockSpec((1, C, 1), lambda b, t: (b, 0, 0)),
        ],
        out_specs=pl.BlockSpec((1, C, tile_hw), lambda b, t: (b, 0, t)),
        compiler_params=pltpu.CompilerParams(
            dimension_semantics=("parallel", "parallel"),
            vmem_limit_bytes=_VMEM_LIMIT),
    )(x3, attn)

    return out3.reshape(B, C, H, W)


# ---------------------------------------------------------------------------
# Pure-JAX reference (for correctness check)
# ---------------------------------------------------------------------------
def reference(x, w):
    B, C, H, W = x.shape
    k = int(w.shape[-1])
    pad = (k - 1) // 2
    pooled = jnp.mean(x.astype(jnp.float32), axis=(2, 3))       # [B, C]
    pp = jnp.pad(pooled, ((0, 0), (pad, pad)))
    y = jnp.zeros((B, C), jnp.float32)
    for j in range(k):
        y = y + w[j] * pp[:, j:j + C]
    attn = jax.nn.sigmoid(y)
    return (x * attn[:, :, None, None].astype(x.dtype)).astype(x.dtype)


if __name__ == "__main__":
    key = jax.random.PRNGKey(0)
    B, C, H, W = 2, 32, 16, 16
    kx, kw = jax.random.split(key)
    x = jax.random.normal(kx, (B, C, H, W), jnp.float32)

    k = eca_kernel_size(C)                                       # k = 3 for C = 32
    w = 0.5 * jax.random.normal(kw, (k,), jnp.float32)           # Conv1d(1,1,k) weight

    ref = reference(x, w)

    # Fused single-pass path (taken automatically at these shapes).
    out = jax.block_until_ready(eca_attention(x, w))
    assert out.shape == (B, C, H, W), out.shape
    err = float(jnp.max(jnp.abs(out - ref)))
    assert jnp.allclose(out, ref, rtol=1e-3, atol=1e-5), f"fused max abs err {err}"

    # Two-pass fallback path (forced, with a small tile so accumulation over
    # multiple HW tiles is exercised).
    out2 = jax.block_until_ready(
        eca_attention(x, w, force_two_pass=True, two_pass_tile_hw=128))
    err2 = float(jnp.max(jnp.abs(out2 - ref)))
    assert jnp.allclose(out2, ref, rtol=1e-3, atol=1e-5), f"two-pass max abs err {err2}"

    print("KERNEL_OK")
</pallas_src>

<mosaic_0001>
module attributes {stable_mosaic.version = 11 : i64} {
  func.func @_fused_kernel(%arg0: i32, %arg1: memref<3xf32, #tpu.memory_space<smem>>, %arg2: memref<1x32x256xf32, #tpu.memory_space<vmem>>, %arg3: memref<1x32x256xf32, #tpu.memory_space<vmem>>, %arg4: memref<34x1xf32, #tpu.memory_space<vmem>>) attributes {dimension_semantics = [#tpu.dimension_semantics<parallel>], iteration_bounds = array<i64: 2>, scalar_prefetch = 0 : i64, scratch_operands = 1 : i64, tpu.core_type = #tpu.core_type<tc>, window_params = [{transform_indices = @transform_0, window_bounds = array<i64: 3>}, {transform_indices = @transform_1, window_bounds = array<i64: 1, 32, 256>}, {transform_indices = @transform_2, window_bounds = array<i64: 1, 32, 256>}]} {
    %c0 = arith.constant 0 : index
    %c0_0 = arith.constant 0 : index
    %c0_1 = arith.constant 0 : index
    %0 = vector.load %arg2[%c0, %c0_0, %c0_1] : memref<1x32x256xf32, #tpu.memory_space<vmem>>, vector<1x32x256xf32>
    %1 = vector.shape_cast %0 : vector<1x32x256xf32> to vector<32x256xf32>
    %cst = arith.constant dense<0.000000e+00> : vector<32xf32>
    %2 = vector.multi_reduction <add>, %1, %cst [1] : vector<32x256xf32> to vector<32xf32>
    %3 = vector.shape_cast %2 : vector<32xf32> to vector<32x1xf32>
    %cst_2 = arith.constant 3.906250e-03 : f32
    %4 = vector.broadcast %cst_2 : f32 to vector<32x1xf32>
    %5 = arith.mulf %3, %4 : vector<32x1xf32>
    %cst_3 = arith.constant 0.000000e+00 : f32
    %6 = vector.broadcast %cst_3 : f32 to vector<34x1xf32>
    %c0_4 = arith.constant 0 : index
    %c0_5 = arith.constant 0 : index
    %7 = vector.load %arg4[%c0_4, %c0_5] : memref<34x1xf32, #tpu.memory_space<vmem>>, vector<34x1xf32>
    tpu.vector_store %arg4[%c0_4, %c0_5], %6 {strides = array<i32>} : memref<34x1xf32, #tpu.memory_space<vmem>>, vector<34x1xf32>,
    %c1 = arith.constant 1 : index
    %c0_6 = arith.constant 0 : index
    %8 = vector.load %arg4[%c1, %c0_6] : memref<34x1xf32, #tpu.memory_space<vmem>>, vector<32x1xf32>
    tpu.vector_store %arg4[%c1, %c0_6], %5 {strides = array<i32>} : memref<34x1xf32, #tpu.memory_space<vmem>>, vector<32x1xf32>,
    %c0_7 = arith.constant 0 : index
    %9 = memref.load %arg1[%c0_7] : memref<3xf32, #tpu.memory_space<smem>>
    %c0_8 = arith.constant 0 : index
    %c0_9 = arith.constant 0 : index
    %10 = vector.load %arg4[%c0_8, %c0_9] : memref<34x1xf32, #tpu.memory_space<vmem>>, vector<32x1xf32>
    %11 = vector.broadcast %9 : f32 to vector<32x1xf32>
    %12 = arith.mulf %11, %10 : vector<32x1xf32>
    %c1_10 = arith.constant 1 : index
    %13 = memref.load %arg1[%c1_10] : memref<3xf32, #tpu.memory_space<smem>>
    %c1_11 = arith.constant 1 : index
    %c0_12 = arith.constant 0 : index
    %14 = vector.load %arg4[%c1_11, %c0_12] : memref<34x1xf32, #tpu.memory_space<vmem>>, vector<32x1xf32>
    %15 = vector.broadcast %13 : f32 to vector<32x1xf32>
    %16 = arith.mulf %15, %14 : vector<32x1xf32>
    %17 = arith.addf %12, %16 : vector<32x1xf32>
    %c2 = arith.constant 2 : index
    %18 = memref.load %arg1[%c2] : memref<3xf32, #tpu.memory_space<smem>>
    %c2_13 = arith.constant 2 : index
    %c0_14 = arith.constant 0 : index
    %19 = vector.load %arg4[%c2_13, %c0_14] : memref<34x1xf32, #tpu.memory_space<vmem>>, vector<32x1xf32>
    %20 = vector.broadcast %18 : f32 to vector<32x1xf32>
    %21 = arith.mulf %20, %19 : vector<32x1xf32>
    %22 = arith.addf %17, %21 : vector<32x1xf32>
    %23 = arith.negf %22 : vector<32x1xf32>
    %24 = math.exp %23 : vector<32x1xf32>
    %cst_15 = arith.constant 1.000000e+00 : f32
    %25 = vector.broadcast %cst_15 : f32 to vector<32x1xf32>
    %26 = arith.addf %25, %24 : vector<32x1xf32>
    %27 = arith.divf %25, %26 : vector<32x1xf32>
    %c0_16 = arith.constant 0 : index
    %c0_17 = arith.constant 0 : index
    %c0_18 = arith.constant 0 : index
    %28 = vector.load %arg2[%c0_16, %c0_17, %c0_18] : memref<1x32x256xf32, #tpu.memory_space<vmem>>, vector<1x32x256xf32>
    %29 = vector.shape_cast %28 : vector<1x32x256xf32> to vector<32x256xf32>
    %30 = vector.broadcast %27 : vector<32x1xf32> to vector<32x256xf32>
    %31 = arith.mulf %29, %30 : vector<32x256xf32>
    %c0_19 = arith.constant 0 : index
    %c0_20 = arith.constant 0 : index
    %c0_21 = arith.constant 0 : index
    %32 = vector.load %arg3[%c0_19, %c0_20, %c0_21] : memref<1x32x256xf32, #tpu.memory_space<vmem>>, vector<1x32x256xf32>
    %33 = vector.shape_cast %32 : vector<1x32x256xf32> to vector<32x256xf32>
    %34 = vector.shape_cast %31 : vector<32x256xf32> to vector<1x32x256xf32>
    tpu.vector_store %arg3[%c0_19, %c0_20, %c0_21], %34 {strides = array<i32>} : memref<1x32x256xf32, #tpu.memory_space<vmem>>, vector<1x32x256xf32>,
    return
  }
  func.func @transform_0(%arg0: i32) -> i32 {
    %c0_i32 = arith.constant 0 : i32
    %c0_i32_0 = arith.constant 0 : i32
    return %c0_i32 : i32
  }
  func.func @transform_1(%arg0: i32) -> (i32, i32, i32) {
    %c0_i32 = arith.constant 0 : i32
    %c0_i32_0 = arith.constant 0 : i32
    %c0_i32_1 = arith.constant 0 : i32
    return %arg0, %c0_i32, %c0_i32_0 : i32, i32, i32
  }
  func.func @transform_2(%arg0: i32) -> (i32, i32, i32) {
    %c0_i32 = arith.constant 0 : i32
    %c0_i32_0 = arith.constant 0 : i32
    %c0_i32_1 = arith.constant 0 : i32
    return %arg0, %c0_i32, %c0_i32_0 : i32, i32, i32
  }
}

</mosaic_0001>

<llo_original>
// kernel: tpu_custom_call.1
$region0: #{tpu_custom_call.1}
  #allocation0 [shape = 'u32[]', space=smem, size = 0x4, offset = 0x4, fixed_abs, tag = 'smem constant byte address 0x4 - core index']
  #allocation1 [shape = 'u32[144,128]{1,0:T(1,128)}', space=vmem, size = 0x12000, scoped, tag = 'internal scratch']
  #allocation2 [shape = 'f32[34,1]{1,0:T(8,128)}', space=vmem, size = 0x5000, scoped, tag = 'scratch operand']
  %s0 = inlined_call_operand.hbm [shape: f32[3], index: 0, kind: input, shape index: {}]
  %s1 = inlined_call_operand.hbm [shape: f32[2,32,256], index: 1, kind: input, shape index: {}]
  %s2 = inlined_call_operand.hbm [shape: f32[2,32,256], index: 2, kind: output, shape index: {}]
  %s3 = sld [smem:[#allocation0]]
  $region49: #{tpu_custom_call.1} parent=0
    _
  %s5 = ssub.s32 1, %s3
  %s6 = scalar_select 0, %s5, %s3
  $region1: #{tpu_custom_call.1} parent=0
    #allocation3 [shape = 'u8[512]{0}', space=smem, size = 0x200, scoped, tag = 'input window, operand 0, single buffered']
    #allocation4 [shape = 's32[2]{0}', space=sflag, size = 0x8, scoped, tag = 'scoped memory for tpu_custom_call.1']
    #allocation5 [shape = 's32[2]{0}', space=sflag, size = 0x8, scoped, tag = 'scoped memory for tpu_custom_call.1']
    #allocation6 [shape = 's32[2]{0}', space=sflag, size = 0x8, scoped, tag = 'scoped memory for tpu_custom_call.1']
    #allocation7 [shape = 'u8[65536]{0}', space=vmem, size = 0x10000, scoped, tag = 'input window, operand 1']
    #allocation8 [shape = 'u8[65536]{0}', space=vmem, size = 0x10000, scoped, tag = 'output window, operand 0']
    %7 = vsyncpa [#allocation6], 0
    %8 = vsyncpa [#allocation4], 0
    %s9 = scalar_lea.sflag [#allocation4], 1
    %10 = vsyncpa %s9, 0
    %11 = vsyncpa [#allocation5], 0
    %s12 = scalar_lea.sflag [#allocation5], 1
    %13 = vsyncpa %s12, 0
    loop: start=0, step=1, limit=4
    $region2: #{tpu_custom_call.1} parent=1 // loop_pre_header
      _
    $region3: #{tpu_custom_call.1} parent=1 // loop_header
      %s15 = sphi 0, %s19
      %p16 = scmp.ge.s32.totalorder %s15, 4
      %s23 = sphi 0, %s23
      %s25 = sphi 0, %s23
      %s26 = sphi 0, %s25
      %s40 = sphi 0, %s26
      %s46 = sphi 0, %s48
      %s49 = sphi 0, %s46
      %s50 = sphi 0, %s49
      %s66 = sphi 0, %s50
      %s72 = sphi 0, %s74
      %s75 = sphi 0, %s72
      %s76 = sphi 0, %s75
      %s92 = sphi 0, %s76
    $region4: #{tpu_custom_call.1} parent=1 // loop_header_branch
      %18 = sbr.rel (%p16) target = $region8
    $region5: #{tpu_custom_call.1} parent=1 // loop_body
      %s20 = ssub.s32 %s15, 1
      %s21 = ssub.s32 %s15, 2
      %s22 = sadd.s32 %s15, 1
      %s24 = sadd.s32 %s23, 1
      %p27 = scmp.eq.s32.totalorder %s15, 1
      %p28 = scmp.ne.s32.totalorder %s23, %s25
      %p29 = scmp.eq.s32.totalorder %s15, 0
      %p30 = por %p28, %p29
      %p31 = scmp.ne.s32.totalorder %s23, %s25
      %p32 = scmp.eq.s32.totalorder %s20, 1
      %p33 = por %p31, %p32
      %p34 = scmp.ne.s32.totalorder %s25, %s26
      %p35 = scmp.eq.s32.totalorder %s20, 0
      %p36 = por %p34, %p35
      %p37 = scmp.ne.s32.totalorder %s25, %s26
      %p38 = scmp.eq.s32.totalorder %s21, 1
      %p39 = por %p37, %p38
      %p41 = scmp.ne.s32.totalorder %s26, %s40
      %p42 = scmp.eq.s32.totalorder %s21, 0
      %p43 = por %p41, %p42
      %s44 = ssub.s32 %s15, %s22
      %p45 = scmp.eq.s32.totalorder %s44, 0
      %s47 = sadd.s32 %s46, 1
      %s48 = scalar_select %p45, %s46, %s47
      %p51 = pneg %p45
      %p52 = scmp.eq.s32.totalorder %s15, 1
      %p53 = por %p51, %p52
      %p54 = scmp.ne.s32.totalorder %s46, %s49
      %p55 = scmp.eq.s32.totalorder %s15, 0
      %p56 = por %p54, %p55
      %p57 = scmp.ne.s32.totalorder %s46, %s49
      %p58 = scmp.eq.s32.totalorder %s20, 1
      %p59 = por %p57, %p58
      %p60 = scmp.ne.s32.totalorder %s49, %s50
      %p61 = scmp.eq.s32.totalorder %s20, 0
      %p62 = por %p60, %p61
      %p63 = scmp.ne.s32.totalorder %s49, %s50
      %p64 = scmp.eq.s32.totalorder %s21, 1
      %p65 = por %p63, %p64
      %p67 = scmp.ne.s32.totalorder %s50, %s66
      %p68 = scmp.eq.s32.totalorder %s21, 0
      %p69 = por %p67, %p68
      %s70 = ssub.s32 %s15, %s22
      %p71 = scmp.eq.s32.totalorder %s70, 0
      %s73 = sadd.s32 %s72, 1
      %s74 = scalar_select %p71, %s72, %s73
      %p77 = pneg %p71
      %p78 = scmp.eq.s32.totalorder %s15, 1
      %p79 = por %p77, %p78
      %p80 = scmp.ne.s32.totalorder %s72, %s75
      %p81 = scmp.eq.s32.totalorder %s15, 0
      %p82 = por %p80, %p81
      %p83 = scmp.ne.s32.totalorder %s72, %s75
      %p84 = scmp.eq.s32.totalorder %s20, 1
      %p85 = por %p83, %p84
      %p86 = scmp.ne.s32.totalorder %s75, %s76
      %p87 = scmp.eq.s32.totalorder %s20, 0
      %p88 = por %p86, %p87
      %p89 = scmp.ne.s32.totalorder %s75, %s76
      %p90 = scmp.eq.s32.totalorder %s21, 1
      %p91 = por %p89, %p90
      %p93 = scmp.ne.s32.totalorder %s76, %s92
      %p94 = scmp.eq.s32.totalorder %s21, 0
      %p95 = por %p93, %p94
      %p96 = scmp.le.s32.totalorder 1, %s15
      %p97 = scmp.lt.s32.totalorder %s15, 3
      %p98 = pnand %p96, %p97
      %p99 = pneg %p98
      // Predicated region
      $region9: #{tpu_custom_call.1} parent=5 // pred_check
        _
      $region10: #{tpu_custom_call.1} parent=5 // pred_check_branch
        %101 = sbr.rel (%p98) target = $region12
      $region11: #{tpu_custom_call.1} parent=5 // pred_region
        %s102 = ssub.s32 %s15, 1
        // Predicated region
        $region13: #{tpu_custom_call.1} parent=11 // pred_check
          %p103 = pneg %p36
        $region14: #{tpu_custom_call.1} parent=11 // pred_check_branch
          %105 = sbr.rel (%p103) target = $region16
        $region15: #{tpu_custom_call.1} parent=11 // pred_region
          %s107 = ssub.s32 16, 16
          %108 = vsyncadd [#allocation6], %s107
          %111 = dma.hbm_to_smem %s0, 16, [#allocation3], [#allocation6]
        $region16: #{tpu_custom_call.1} parent=11 // pred_fallthru
          _
      $region12: #{tpu_custom_call.1} parent=5 // pred_fallthru
        _
      %p112 = scmp.lt.s32.totalorder %s15, 2
      // Predicated region
      $region17: #{tpu_custom_call.1} parent=5 // pred_check
        %p113 = pneg %p112
      $region18: #{tpu_custom_call.1} parent=5 // pred_check_branch
        %115 = sbr.rel (%p113) target = $region20
      $region19: #{tpu_custom_call.1} parent=5 // pred_region
        // Predicated region
        $region21: #{tpu_custom_call.1} parent=19 // pred_check
          %p116 = pneg %p56
        $region22: #{tpu_custom_call.1} parent=19 // pred_check_branch
          %118 = sbr.rel (%p116) target = $region24
        $region23: #{tpu_custom_call.1} parent=19 // pred_region
          %s119 = sand.u32 %s46, 1
          %s120 = scalar_lea.sflag [#allocation4], %s119
          %s121 = sand.u32 %s46, 1
          %s122 = smul.addr %s121, 64
          %s123 = scalar_lea.vmem [#allocation7], %s122
          %s125 = ssub.s32 1024, 1024
          %126 = vsyncadd %s120, %s125
          %s127 = smul.addr %s15, 8
          %s128 = smul.addr %s127, 128
          %s129 = scalar_lea.hbm %s1, %s128
          %s130 = sshll.u32 %s123, 4
          %s131 = int_to_ptr.vmem [resolvable:$true] %s130
          %136 = dma.hbm_to_vmem [thread:$0]  %s129, 1024, %s131, %s120, 256, 256, 16
        $region24: #{tpu_custom_call.1} parent=19 // pred_fallthru
          _
      $region20: #{tpu_custom_call.1} parent=5 // pred_fallthru
        _
      %p137 = scmp.le.s32.totalorder 1, %s15
      %p138 = scmp.lt.s32.totalorder %s15, 3
      %p139 = pnand %p137, %p138
      %p140 = pneg %p139
      // Predicated region
      $region25: #{tpu_custom_call.1} parent=5 // pred_check
        _
      $region26: #{tpu_custom_call.1} parent=5 // pred_check_branch
        %142 = sbr.rel (%p139) target = $region28
      $region27: #{tpu_custom_call.1} parent=5 // pred_region
        %s143 = ssub.s32 %s15, 1
        // Predicated region
        $region29: #{tpu_custom_call.1} parent=27 // pred_check
          %p144 = pneg %p36
        $region30: #{tpu_custom_call.1} parent=27 // pred_check_branch
          %146 = sbr.rel (%p144) target = $region32
        $region31: #{tpu_custom_call.1} parent=27 // pred_region
          %147 = dma.done [#allocation6], 16
        $region32: #{tpu_custom_call.1} parent=27 // pred_fallthru
          _
        %s148 = sand.u32 %s49, 1
        %s149 = scalar_lea.sflag [#allocation4], %s148
        %s150 = sand.u32 %s49, 1
        %s151 = smul.addr %s150, 64
        %s152 = scalar_lea.vmem [#allocation7], %s151
        // Predicated region
        $region33: #{tpu_custom_call.1} parent=27 // pred_check
          %p153 = pneg %p62
        $region34: #{tpu_custom_call.1} parent=27 // pred_check_branch
          %155 = sbr.rel (%p153) target = $region36
        $region35: #{tpu_custom_call.1} parent=27 // pred_region
          %156 = dma.done %s149, 1024
        $region36: #{tpu_custom_call.1} parent=27 // pred_fallthru
          _
        %157 = sfence
        %p158 = pneg %p36
        %p159 = pneg %p33
        %s160 = sand.u32 %s49, 1
        %s161 = scalar_lea.sflag [#allocation4], %s160
        %s162 = sand.u32 %s49, 1
        %s163 = smul.addr %s162, 64
        %s164 = scalar_lea.vmem [#allocation7], %s163
        %p165 = pneg %p62
        %p166 = pneg %p59
        %p167 = pneg %p88
        %p168 = pneg %p85
        %s169 = sand.u32 %s75, 1
        %s170 = scalar_lea.sflag [#allocation5], %s169
        %s171 = sand.u32 %s75, 1
        %s172 = smul.addr %s171, 64
        %s173 = scalar_lea.vmem [#allocation8], %s172
        %v174 = vld [vmem:[%s152] sm:$0xff]
        %v175 = vld [vmem:[%s152 + $0x8] sm:$0xff]
        %v176 = vld [vmem:[%s152 + $0x10] sm:$0xff]
        %v177 = vld [vmem:[%s152 + $0x18] sm:$0xff]
        %v178 = vld [vmem:[%s152 + $0x20] sm:$0xff]
        %v179 = vld [vmem:[%s152 + $0x28] sm:$0xff]
        %v180 = vld [vmem:[%s152 + $0x30] sm:$0xff]
        %v181 = vld [vmem:[%s152 + $0x38] sm:$0xff]
        %v182 = vadd.f32 %v174, %v175
        %183 = vadd.xlane.f32.xlu0 %v182
        %v184 = vpop.xlane.xlu0 %183
        %v185 = vadd.f32 %v176, %v177
        %186 = vadd.xlane.f32.xlu0 %v185
        %v187 = vpop.xlane.xlu0 %186
        %v188 = vadd.f32 %v178, %v179
        %189 = vadd.xlane.f32.xlu0 %v188
        %v190 = vpop.xlane.xlu0 %189
        %v191 = vadd.f32 %v180, %v181
        %192 = vadd.xlane.f32.xlu0 %v191
        %v193 = vpop.xlane.xlu0 %192
        %v194 = vmul.f32 %v184, 0.00390625
        %v195 = vmul.f32 %v187, 0.00390625
        %v196 = vmul.f32 %v190, 0.00390625
        %v197 = vmul.f32 %v193, 0.00390625
        %vm198 = vcmask 7168
        %199 = vst.msk [vmem:[#allocation2] sm:$0xff] %vm198, 0.0
        %200 = vst.msk [vmem:[#allocation2 + $0x8] sm:$0xff] %vm198, 0.0
        %201 = vst.msk [vmem:[#allocation2 + $0x10] sm:$0xff] %vm198, 0.0
        %202 = vst.msk [vmem:[#allocation2 + $0x18] sm:$0xff] %vm198, 0.0
        %vm203 = vcmask 1024
        %204 = vst.msk [vmem:[#allocation2 + $0x20] sm:$0x3] %vm203, 0.0
        %205 = vst.msk [vmem:[#allocation2 + $0x1] sm:$0xff] %vm198, %v194
        %206 = vst.msk [vmem:[#allocation2 + $0x9] sm:$0xff] %vm198, %v195
        %207 = vst.msk [vmem:[#allocation2 + $0x11] sm:$0xff] %vm198, %v196
        %208 = vst.msk [vmem:[#allocation2 + $0x19] sm:$0xff] %vm198, %v197
        %s209 = sld [smem:[#allocation3]]
        %v210 = vld [vmem:[#allocation2] sm:$0xff]
        %v211 = vld [vmem:[#allocation2 + $0x8] sm:$0xff]
        %v212 = vld [vmem:[#allocation2 + $0x10] sm:$0xff]
        %v213 = vld [vmem:[#allocation2 + $0x18] sm:$0xff]
        %v214 = vstv %s209
        %v215 = vmul.f32 %v214, %v210
        %v216 = vmul.f32 %v214, %v211
        %v217 = vmul.f32 %v214, %v212
        %v218 = vmul.f32 %v214, %v213
        %s219 = sld [smem:[#allocation3 + $0x1]]
        %v220 = vld [vmem:[#allocation2 + $0x1] sm:$0xff]
        %v221 = vld [vmem:[#allocation2 + $0x9] sm:$0xff]
        %v222 = vld [vmem:[#allocation2 + $0x11] sm:$0xff]
        %v223 = vld [vmem:[#allocation2 + $0x19] sm:$0xff]
        %v224 = vstv %s219
        %v225 = vmul.f32 %v224, %v220
        %v226 = vmul.f32 %v224, %v221
        %v227 = vmul.f32 %v224, %v222
        %v228 = vmul.f32 %v224, %v223
        %v229 = vadd.f32 %v215, %v225
        %v230 = vadd.f32 %v216, %v226
        %v231 = vadd.f32 %v217, %v227
        %v232 = vadd.f32 %v218, %v228
        %s233 = sld [smem:[#allocation3 + $0x2]]
        %v234 = vld [vmem:[#allocation2 + $0x2] sm:$0xff]
        %v235 = vld [vmem:[#allocation2 + $0xa] sm:$0xff]
        %v236 = vld [vmem:[#allocation2 + $0x12] sm:$0xff]
        %v237 = vld [vmem:[#allocation2 + $0x1a] sm:$0xff]
        %v238 = vstv %s233
        %v239 = vmul.f32 %v238, %v234
        %v240 = vmul.f32 %v238, %v235
        %v241 = vmul.f32 %v238, %v236
        %v242 = vmul.f32 %v238, %v237
        %v243 = vadd.f32 %v229, %v239
        %v244 = vadd.f32 %v230, %v240
        %v245 = vadd.f32 %v231, %v241
        %v246 = vadd.f32 %v232, %v242
        %v247 = vxor.u32 %v243, 2147483648
        %v248 = vxor.u32 %v244, 2147483648
        %v249 = vxor.u32 %v245, 2147483648
        %v250 = vxor.u32 %v246, 2147483648
        %v251 = vmul.f32 %v247, 1.442695
        %v252 = vpow.pop %v251
        %v253 = vmul.f32 %v248, 1.442695
        %v254 = vpow.pop %v253
        %v255 = vmul.f32 %v249, 1.442695
        %v256 = vpow.pop %v255
        %v257 = vmul.f32 %v250, 1.442695
        %v258 = vpow.pop %v257
        %v259 = vadd.f32 %v252, 1.0
        %v260 = vadd.f32 %v254, 1.0
        %v261 = vadd.f32 %v256, 1.0
        %v262 = vadd.f32 %v258, 1.0
        %v263 = vrcp.pop %v259
        %v264 = vmul.f32 1.0, %v263
        %v265 = vrcp.pop %v260
        %v266 = vmul.f32 1.0, %v265
        %v267 = vrcp.pop %v261
        %v268 = vmul.f32 1.0, %v267
        %v269 = vrcp.pop %v262
        %v270 = vmul.f32 1.0, %v269
        %v271 = vld [vmem:[%s152] sm:$0xff]
        %v272 = vld [vmem:[%s152 + $0x8] sm:$0xff]
        %v273 = vld [vmem:[%s152 + $0x10] sm:$0xff]
        %v274 = vld [vmem:[%s152 + $0x18] sm:$0xff]
        %v275 = vld [vmem:[%s152 + $0x20] sm:$0xff]
        %v276 = vld [vmem:[%s152 + $0x28] sm:$0xff]
        %v277 = vld [vmem:[%s152 + $0x30] sm:$0xff]
        %v278 = vld [vmem:[%s152 + $0x38] sm:$0xff]
        %280 = vset.pattern.permute.xlu0 0
        %281 = vperm.xlu0 %280, %v264
        %v282 = vpop.permute.xlu0 %281
        %285 = vset.pattern.permute.xlu0 0
        %286 = vperm.xlu0 %285, %v266
        %v287 = vpop.permute.xlu0 %286
        %290 = vset.pattern.permute.xlu0 0
        %291 = vperm.xlu0 %290, %v268
        %v292 = vpop.permute.xlu0 %291
        %295 = vset.pattern.permute.xlu0 0
        %296 = vperm.xlu0 %295, %v270
        %v297 = vpop.permute.xlu0 %296
        %v299 = vmul.f32 %v271, %v282
        %v300 = vmul.f32 %v272, %v282
        %v301 = vmul.f32 %v273, %v287
        %v302 = vmul.f32 %v274, %v287
        %v303 = vmul.f32 %v275, %v292
        %v304 = vmul.f32 %v276, %v292
        %v305 = vmul.f32 %v277, %v297
        %v306 = vmul.f32 %v278, %v297
        %307 = vst [vmem:[%s173] sm:$0xff] %v299
        %308 = vst [vmem:[%s173 + $0x8] sm:$0xff] %v300
        %309 = vst [vmem:[%s173 + $0x10] sm:$0xff] %v301
        %310 = vst [vmem:[%s173 + $0x18] sm:$0xff] %v302
        %311 = vst [vmem:[%s173 + $0x20] sm:$0xff] %v303
        %312 = vst [vmem:[%s173 + $0x28] sm:$0xff] %v304
        %313 = vst [vmem:[%s173 + $0x30] sm:$0xff] %v305
        %314 = vst [vmem:[%s173 + $0x38] sm:$0xff] %v306
        %s315 = sand.u32 %s75, 1
        %s316 = scalar_lea.sflag [#allocation5], %s315
        %s317 = sand.u32 %s75, 1
        %s318 = smul.addr %s317, 64
        %s319 = scalar_lea.vmem [#allocation8], %s318
        // Predicated region
        $region37: #{tpu_custom_call.1} parent=27 // pred_check
          %p320 = pneg %p85
        $region38: #{tpu_custom_call.1} parent=27 // pred_check_branch
          %322 = sbr.rel (%p320) target = $region40
        $region39: #{tpu_custom_call.1} parent=27 // pred_region
          %s324 = ssub.s32 1024, 1024
          %325 = vsyncadd %s316, %s324
          %s326 = smul.addr %s20, 8
          %s327 = smul.addr %s326, 128
          %s328 = scalar_lea.hbm %s2, %s327
          %s329 = sshll.u32 %s319, 4
          %s330 = int_to_ptr.vmem [resolvable:$true] %s329
          %335 = dma.vmem_to_hbm [thread:$0]  %s330, 1024, %s328, %s316, 256, 256, 16
        $region40: #{tpu_custom_call.1} parent=27 // pred_fallthru
          _
      $region28: #{tpu_custom_call.1} parent=5 // pred_fallthru
        _
      %p336 = scmp.le.s32.totalorder 2, %s15
      // Predicated region
      $region41: #{tpu_custom_call.1} parent=5 // pred_check
        %p337 = pneg %p336
      $region42: #{tpu_custom_call.1} parent=5 // pred_check_branch
        %339 = sbr.rel (%p337) target = $region44
      $region43: #{tpu_custom_call.1} parent=5 // pred_region
        %s340 = ssub.s32 %s15, 2
        // Predicated region
        $region45: #{tpu_custom_call.1} parent=43 // pred_check
          %p341 = pneg %p91
        $region46: #{tpu_custom_call.1} parent=43 // pred_check_branch
          %343 = sbr.rel (%p341) target = $region48
        $region47: #{tpu_custom_call.1} parent=43 // pred_region
          %s344 = sand.u32 %s76, 1
          %s345 = scalar_lea.sflag [#allocation5], %s344
          %s346 = sand.u32 %s76, 1
          %s347 = smul.addr %s346, 64
          %s348 = scalar_lea.vmem [#allocation8], %s347
          %349 = dma.done %s345, 1024
        $region48: #{tpu_custom_call.1} parent=43 // pred_fallthru
          _
      $region44: #{tpu_custom_call.1} parent=5 // pred_fallthru
        _
    $region6: #{tpu_custom_call.1} parent=1 // loop_footer
      %s19 = sadd.s32 1, %s15
    $region7: #{tpu_custom_call.1} parent=1 // loop_footer_branch
      %14 = sbr.rel target = $region3
    $region8: #{tpu_custom_call.1} parent=1 // loop_exit
      _
    %350 = vsyncpa [#allocation4], 1
    %s351 = scalar_lea.sflag [#allocation4], 1
    %352 = vsyncpa %s351, 1
    %353 = vsyncpa [#allocation5], 1
    %s354 = scalar_lea.sflag [#allocation5], 1
    %355 = vsyncpa %s354, 1
    %356 = vsyncpa [#allocation6], 1
    %s357 = scalar_lea.sflag [#allocation6], 1
    %358 = vsyncpa %s357, 1

</llo_original>
